<compile_context>
chip_gen: v6e
topology: v6e:2x2x1
jax: 0.10.0
libtpu: 0.0.40
codegen_flags: <defaults>
</compile_context>

<pallas_src>
import math

import jax
import jax.numpy as jnp
from jax import lax
from jax.experimental import pallas as pl
from jax.experimental.pallas import tpu as pltpu


# ----------------------------------------------------------------------------
# Linear-map view of the bilinear 2x upsample (align_corners=False).
# ----------------------------------------------------------------------------
def _upsample_matrix(L):
    """(2L, L) matrix U such that U @ v == bilinear 2x upsample of v."""
    out = jnp.arange(2 * L, dtype=jnp.float32)
    src = jnp.maximum((out + 0.5) / 2.0 - 0.5, 0.0)   # PyTorch clamps negatives to 0
    i0 = jnp.minimum(jnp.floor(src).astype(jnp.int32), L - 1)
    i1 = jnp.minimum(i0 + 1, L - 1)
    w1 = src - i0.astype(jnp.float32)
    w0 = 1.0 - w1
    U = jnp.zeros((2 * L, L), jnp.float32)
    rows = jnp.arange(2 * L)
    U = U.at[rows, i0].add(w0)
    U = U.at[rows, i1].add(w1)                         # edge rows: w0 + w1 -> 1.0
    return U


# ----------------------------------------------------------------------------
# Pallas kernel: fused (upsample + pad + conv) as 2 matmuls/image, bias + LeakyReLU.
# ----------------------------------------------------------------------------
def upsample_conv_kernel(x_ref, ch_ref, wstack_ref, b_ref, o_ref):
    # x_ref:      (NB, H, W*Cin)        bf16  original images, channels-last flattened
    # ch_ref:     (KH, THo, H)          bf16  H-upsample+pad folded per conv row tap
    # wstack_ref: (KH*W*Cin, Wo*Cout)   bf16  kh-stacked (W-upsample+pad+kw) weights
    # b_ref:      (1, Wo*Cout)          f32   bias tiled over output columns
    # o_ref:      (NB, THo, Wo*Cout)          lane-dense output tile
    NB = x_ref.shape[0]
    KH, THo, H = ch_ref.shape

    # Collapse (KH, THo) -> KH*THo: sublane-aligned leading-dim collapse (free).
    ch2 = ch_ref[...].reshape(KH * THo, H)
    wstack = wstack_ref[...]
    bias = b_ref[...]

    # Static unroll over the batch tile (NB is small).
    # TODO(synk): switch to lax.fori_loop for large NB to bound live ranges.
    for n in range(NB):
        # Stage 1: all KH row taps in ONE MXU pass (bf16 operands, f32 acc).
        rows3 = jnp.dot(ch2, x_ref[n],
                        preferred_element_type=jnp.float32)      # (KH*THo, W*Cin)
        # Lane-concat the KH sublane-aligned row blocks -> (THo, KH*W*Cin):
        # this becomes the 192-deep contraction of the next matmul.
        rows_cat = jnp.concatenate(
            [rows3[kh * THo:(kh + 1) * THo] for kh in range(KH)], axis=1)
        # Stage 2: single well-shaped matmul, bf16 operands, f32 accumulate.
        acc = jnp.dot(rows_cat.astype(jnp.bfloat16), wstack,
                      preferred_element_type=jnp.float32)        # (THo, Wo*Cout)
        acc = acc + bias                                         # f32 epilogue
        acc = jnp.where(acc >= 0, acc, 0.1 * acc)                # LeakyReLU(0.1)
        o_ref[n] = acc.astype(o_ref.dtype)


# ----------------------------------------------------------------------------
# Wrapper (PyTorch semantics: NCHW in, NCHW out)
# ----------------------------------------------------------------------------
def upsample_conv_layer(x_nchw, weight_oihw, bias, *, stride=1, padding=0):
    assert stride == 1, "only stride=1 is implemented"  # TODO(synk): general stride
    N, Cin, H, W = x_nchw.shape
    Cout, Cin_w, KH, KW = weight_oihw.shape
    assert Cin == Cin_w

    Hp, Wp = 2 * H + 2 * padding, 2 * W + 2 * padding
    Ho, Wo = Hp - KH + 1, Wp - KW + 1
    WC, WoC = W * Cin, Wo * Cout

    # Batch tile: whole batch per grid step for small N (amortizes per-step
    # overhead and the x DMA); Ho row-tiles supply the v7x parallel axis.
    NB = N if N <= 8 else 8
    assert N % NB == 0, "batch must divide the batch tile"
    n_ho = 2 if (Ho % 2 == 0 and (Ho // 2) % 8 == 0) else 1
    THo = Ho // n_ho

    # NCHW -> (N, H, W*Cin), channels-last, bf16 MXU operand.
    # TODO(synk): these wrapper transposes (and the final NCHW one) disappear if
    # the surrounding model is channels-last; do NOT fold them into an NCHW
    # out_spec (Wo=32 lanes would reintroduce masked vst.msk stores).
    x_flat = jnp.transpose(x_nchw, (0, 2, 3, 1)).reshape(N, H, WC).astype(jnp.bfloat16)

    # Upsample + zero-pad as linear maps along H and W.
    PH = jnp.pad(_upsample_matrix(H), ((padding, padding), (0, 0)))   # (Hp, H)
    PW = jnp.pad(_upsample_matrix(W), ((padding, padding), (0, 0)))   # (Wp, W)

    # CH[kh, oh, h] = PH[oh + kh, h]; entries in {0,.25,.5,.75,1} -> exact in bf16.
    CH = jnp.stack([PH[kh:kh + Ho] for kh in range(KH)], axis=0).astype(jnp.bfloat16)

    # W_stack[(kh, w, ci), (ow, co)] = sum_kw K[kh,kw,ci,co] * PW[ow+kw, w]
    # (built in f32, cast once to bf16).
    w_hwio = jnp.transpose(weight_oihw, (2, 3, 1, 0)).astype(jnp.float32)  # (KH,KW,Cin,Cout)
    PW_taps = jnp.stack([PW[kw:kw + Wo] for kw in range(KW)], axis=0)      # (KW, Wo, W)
    weff = jnp.einsum('abio,bvw->awivo', w_hwio, PW_taps)         # (KH, W, Cin, Wo, Cout)
    w_stack = weff.reshape(KH * WC, WoC).astype(jnp.bfloat16)

    # Bias layout is (ow major, co minor) -- intentionally coupled to w_stack's
    # output-column order above.  Epilogue stays f32 (v5e has no bf16 VPU path).
    bias_row = jnp.tile(bias.astype(jnp.float32), Wo).reshape(1, WoC)

    out_flat = pl.pallas_call(
        upsample_conv_kernel,
        out_shape=jax.ShapeDtypeStruct((N, Ho, WoC), x_nchw.dtype),
        grid_spec=pltpu.PrefetchScalarGridSpec(
            num_scalar_prefetch=0,
            grid=(N // NB, n_ho),
            in_specs=[
                pl.BlockSpec((NB, H, WC), lambda b, t: (b, 0, 0)),
                pl.BlockSpec((KH, THo, H), lambda b, t: (0, t, 0)),
                # constant index maps -> folded matrices stay VMEM-resident
                pl.BlockSpec((KH * WC, WoC), lambda b, t: (0, 0)),
                pl.BlockSpec((1, WoC), lambda b, t: (0, 0)),
            ],
            out_specs=pl.BlockSpec((NB, THo, WoC), lambda b, t: (b, t, 0)),
        ),
        compiler_params=pltpu.CompilerParams(
            dimension_semantics=("parallel", "parallel"),
            vmem_limit_bytes=64 * 1024 * 1024),
    )(x_flat, CH, w_stack, bias_row)

    out = out_flat.reshape(N, Ho, Wo, Cout)
    return jnp.transpose(out, (0, 3, 1, 2))                           # -> NCHW


# ----------------------------------------------------------------------------
# Pure-JAX f32 reference (independent gather-based upsample + conv)
# ----------------------------------------------------------------------------
def bilinear_upsample_2x(x_nhwc):
    N, H, W, C = x_nhwc.shape

    def idx_weights(L):
        out = jnp.arange(2 * L, dtype=jnp.float32)
        src = jnp.maximum((out + 0.5) / 2.0 - 0.5, 0.0)
        i0 = jnp.minimum(jnp.floor(src).astype(jnp.int32), L - 1)
        i1 = jnp.minimum(i0 + 1, L - 1)
        w1 = src - i0.astype(jnp.float32)
        w0 = 1.0 - w1
        return i0, i1, w0, w1

    h0, h1, wh0, wh1 = idx_weights(H)
    c0, c1, wc0, wc1 = idx_weights(W)
    xr = (x_nhwc[:, h0, :, :] * wh0[None, :, None, None]
          + x_nhwc[:, h1, :, :] * wh1[None, :, None, None])
    xc = (xr[:, :, c0, :] * wc0[None, None, :, None]
          + xr[:, :, c1, :] * wc1[None, None, :, None])
    return xc


def reference(x_nchw, weight_oihw, bias, *, padding):
    x = jnp.transpose(x_nchw, (0, 2, 3, 1))
    x_up = bilinear_upsample_2x(x)
    w_hwio = jnp.transpose(weight_oihw, (2, 3, 1, 0))
    out = lax.conv_general_dilated(
        x_up, w_hwio, window_strides=(1, 1),
        padding=((padding, padding), (padding, padding)),
        dimension_numbers=("NHWC", "HWIO", "NHWC"))
    out = out + bias[None, None, None, :]
    out = jnp.where(out >= 0, out, 0.1 * out)
    return jnp.transpose(out, (0, 3, 1, 2))


if __name__ == "__main__":
    # Module config: UpsampleConvLayer(in_channels=4, out_channels=8,
    #                                  kernel_size=3, stride=1, padding=1,
    #                                  activation='relu', norm=None)
    # (activation='relu' constructs LeakyReLU(negative_slope=0.1) in this module)
    N, Cin, H, W = 2, 4, 16, 16
    Cout, K, padding = 8, 3, 1

    # Independent golden check of the align_corners=False edge behavior:
    # PyTorch F.interpolate(scale_factor=2, mode='bilinear') of [1,2,3,4].
    up4 = _upsample_matrix(4) @ jnp.array([1.0, 2.0, 3.0, 4.0], jnp.float32)
    golden = jnp.array([1.0, 1.25, 1.75, 2.25, 2.75, 3.25, 3.75, 4.0], jnp.float32)
    assert jnp.allclose(up4, golden, atol=1e-6), "upsample map mismatch vs PyTorch golden"

    key = jax.random.PRNGKey(0)
    kx, kw, kb = jax.random.split(key, 3)

    x = jax.random.normal(kx, (N, Cin, H, W), dtype=jnp.float32)

    # Deterministic param init mimicking nn.Conv2d defaults (uniform +/- 1/sqrt(fan_in)).
    fan_in = Cin * K * K
    bound = 1.0 / math.sqrt(fan_in)
    weight = jax.random.uniform(kw, (Cout, Cin, K, K), jnp.float32, -bound, bound)
    bias = jax.random.uniform(kb, (Cout,), jnp.float32, -bound, bound)

    out = upsample_conv_layer(x, weight, bias, stride=1, padding=padding)
    out = jax.block_until_ready(out)

    ref = jax.block_until_ready(reference(x, weight, bias, padding=padding))
    assert out.shape == (N, Cout, 2 * H, 2 * W), out.shape
    # bf16 MXU operands (f32 accumulation) -> tolerance relaxed vs the f32 reference.
    assert jnp.allclose(out, ref, atol=5e-2, rtol=5e-2), "mismatch vs reference"

    print("KERNEL_OK")
</pallas_src>

<mosaic_0001>
module attributes {stable_mosaic.version = 11 : i64} {
  func.func @upsample_conv_kernel(%arg0: i32, %arg1: i32, %arg2: memref<2x16x64xbf16, #tpu.memory_space<vmem>>, %arg3: memref<3x16x16xbf16, #tpu.memory_space<vmem>>, %arg4: memref<192x256xbf16, #tpu.memory_space<vmem>>, %arg5: memref<1x256xf32, #tpu.memory_space<vmem>>, %arg6: memref<2x16x256xf32, #tpu.memory_space<vmem>>) attributes {dimension_semantics = [#tpu.dimension_semantics<parallel>, #tpu.dimension_semantics<parallel>], iteration_bounds = array<i64: 1, 2>, scalar_prefetch = 0 : i64, scratch_operands = 0 : i64, tpu.core_type = #tpu.core_type<tc>, window_params = [{transform_indices = @transform_0, window_bounds = array<i64: 2, 16, 64>}, {transform_indices = @transform_1, window_bounds = array<i64: 3, 16, 16>}, {pipeline_mode = #tpu.pipeline_mode<synchronous>, transform_indices = @transform_2, window_bounds = array<i64: 192, 256>}, {pipeline_mode = #tpu.pipeline_mode<synchronous>, transform_indices = @transform_3, window_bounds = array<i64: 1, 256>}, {transform_indices = @transform_4, window_bounds = array<i64: 2, 16, 256>}]} {
    %c0 = arith.constant 0 : index
    %c0_0 = arith.constant 0 : index
    %c0_1 = arith.constant 0 : index
    %0 = vector.load %arg3[%c0, %c0_0, %c0_1] : memref<3x16x16xbf16, #tpu.memory_space<vmem>>, vector<3x16x16xbf16>
    %1 = vector.shape_cast %0 : vector<3x16x16xbf16> to vector<48x16xbf16>
    %c0_2 = arith.constant 0 : index
    %c0_3 = arith.constant 0 : index
    %2 = vector.load %arg4[%c0_2, %c0_3] : memref<192x256xbf16, #tpu.memory_space<vmem>>, vector<192x256xbf16>
    %c0_4 = arith.constant 0 : index
    %c0_5 = arith.constant 0 : index
    %3 = vector.load %arg5[%c0_4, %c0_5] : memref<1x256xf32, #tpu.memory_space<vmem>>, vector<1x256xf32>
    %c0_6 = arith.constant 0 : index
    %c0_7 = arith.constant 0 : index
    %c0_8 = arith.constant 0 : index
    %4 = vector.load %arg2[%c0_6, %c0_7, %c0_8] : memref<2x16x64xbf16, #tpu.memory_space<vmem>>, vector<1x16x64xbf16>
    %5 = vector.shape_cast %4 : vector<1x16x64xbf16> to vector<16x64xbf16>
    %cst = arith.constant dense<0.000000e+00> : vector<48x64xf32>
    %6 = tpu.matmul %1, %5, %cst {dimension_numbers = #tpu.dot_dimension_numbers<[1], [0], [0], [1], [0, 0, 1, 1], [], []>} : vector<48x16xbf16>, vector<16x64xbf16>, vector<48x64xf32> -> vector<48x64xf32>
    %7 = vector.extract_strided_slice %6 {offsets = [0, 0], sizes = [16, 64], strides = [1, 1]} : vector<48x64xf32> to vector<16x64xf32>
    %8 = vector.extract_strided_slice %6 {offsets = [16, 0], sizes = [16, 64], strides = [1, 1]} : vector<48x64xf32> to vector<16x64xf32>
    %9 = vector.extract_strided_slice %6 {offsets = [32, 0], sizes = [16, 64], strides = [1, 1]} : vector<48x64xf32> to vector<16x64xf32>
    %10 = tpu.concatenate %7, %8, %9 in 1 : vector<16x64xf32>, vector<16x64xf32>, vector<16x64xf32> -> vector<16x192xf32>
    %11 = arith.truncf %10 : vector<16x192xf32> to vector<16x192xbf16>
    %cst_9 = arith.constant dense<0.000000e+00> : vector<16x256xf32>
    %12 = tpu.matmul %11, %2, %cst_9 {dimension_numbers = #tpu.dot_dimension_numbers<[1], [0], [0], [1], [0, 0, 1, 1], [], []>} : vector<16x192xbf16>, vector<192x256xbf16>, vector<16x256xf32> -> vector<16x256xf32>
    %13 = vector.broadcast %3 : vector<1x256xf32> to vector<16x256xf32>
    %14 = arith.addf %12, %13 : vector<16x256xf32>
    %cst_10 = arith.constant 0.000000e+00 : f32
    %15 = vector.broadcast %cst_10 : f32 to vector<16x256xf32>
    %16 = arith.cmpf oge, %14, %15 : vector<16x256xf32>
    %cst_11 = arith.constant 1.000000e-01 : f32
    %17 = vector.broadcast %cst_11 : f32 to vector<16x256xf32>
    %18 = arith.mulf %17, %14 : vector<16x256xf32>
    %19 = arith.select %16, %14, %18 : vector<16x256xi1>, vector<16x256xf32>
    %c0_12 = arith.constant 0 : index
    %c0_13 = arith.constant 0 : index
    %c0_14 = arith.constant 0 : index
    %20 = vector.load %arg6[%c0_12, %c0_13, %c0_14] : memref<2x16x256xf32, #tpu.memory_space<vmem>>, vector<1x16x256xf32>
    %21 = vector.shape_cast %20 : vector<1x16x256xf32> to vector<16x256xf32>
    %22 = vector.shape_cast %19 : vector<16x256xf32> to vector<1x16x256xf32>
    tpu.vector_store %arg6[%c0_12, %c0_13, %c0_14], %22 {strides = array<i32>} : memref<2x16x256xf32, #tpu.memory_space<vmem>>, vector<1x16x256xf32>,
    %c1 = arith.constant 1 : index
    %c0_15 = arith.constant 0 : index
    %c0_16 = arith.constant 0 : index
    %23 = vector.load %arg2[%c1, %c0_15, %c0_16] : memref<2x16x64xbf16, #tpu.memory_space<vmem>>, vector<1x16x64xbf16>
    %24 = vector.shape_cast %23 : vector<1x16x64xbf16> to vector<16x64xbf16>
    %cst_17 = arith.constant dense<0.000000e+00> : vector<48x64xf32>
    %25 = tpu.matmul %1, %24, %cst_17 {dimension_numbers = #tpu.dot_dimension_numbers<[1], [0], [0], [1], [0, 0, 1, 1], [], []>} : vector<48x16xbf16>, vector<16x64xbf16>, vector<48x64xf32> -> vector<48x64xf32>
    %26 = vector.extract_strided_slice %25 {offsets = [0, 0], sizes = [16, 64], strides = [1, 1]} : vector<48x64xf32> to vector<16x64xf32>
    %27 = vector.extract_strided_slice %25 {offsets = [16, 0], sizes = [16, 64], strides = [1, 1]} : vector<48x64xf32> to vector<16x64xf32>
    %28 = vector.extract_strided_slice %25 {offsets = [32, 0], sizes = [16, 64], strides = [1, 1]} : vector<48x64xf32> to vector<16x64xf32>
    %29 = tpu.concatenate %26, %27, %28 in 1 : vector<16x64xf32>, vector<16x64xf32>, vector<16x64xf32> -> vector<16x192xf32>
    %30 = arith.truncf %29 : vector<16x192xf32> to vector<16x192xbf16>
    %cst_18 = arith.constant dense<0.000000e+00> : vector<16x256xf32>
    %31 = tpu.matmul %30, %2, %cst_18 {dimension_numbers = #tpu.dot_dimension_numbers<[1], [0], [0], [1], [0, 0, 1, 1], [], []>} : vector<16x192xbf16>, vector<192x256xbf16>, vector<16x256xf32> -> vector<16x256xf32>
    %32 = vector.broadcast %3 : vector<1x256xf32> to vector<16x256xf32>
    %33 = arith.addf %31, %32 : vector<16x256xf32>
    %cst_19 = arith.constant 0.000000e+00 : f32
    %34 = vector.broadcast %cst_19 : f32 to vector<16x256xf32>
    %35 = arith.cmpf oge, %33, %34 : vector<16x256xf32>
    %cst_20 = arith.constant 1.000000e-01 : f32
    %36 = vector.broadcast %cst_20 : f32 to vector<16x256xf32>
    %37 = arith.mulf %36, %33 : vector<16x256xf32>
    %38 = arith.select %35, %33, %37 : vector<16x256xi1>, vector<16x256xf32>
    %c1_21 = arith.constant 1 : index
    %c0_22 = arith.constant 0 : index
    %c0_23 = arith.constant 0 : index
    %39 = vector.load %arg6[%c1_21, %c0_22, %c0_23] : memref<2x16x256xf32, #tpu.memory_space<vmem>>, vector<1x16x256xf32>
    %40 = vector.shape_cast %39 : vector<1x16x256xf32> to vector<16x256xf32>
    %41 = vector.shape_cast %38 : vector<16x256xf32> to vector<1x16x256xf32>
    tpu.vector_store %arg6[%c1_21, %c0_22, %c0_23], %41 {strides = array<i32>} : memref<2x16x256xf32, #tpu.memory_space<vmem>>, vector<1x16x256xf32>,
    return
  }
  func.func @transform_0(%arg0: i32, %arg1: i32) -> (i32, i32, i32) {
    %c0_i32 = arith.constant 0 : i32
    %c0_i32_0 = arith.constant 0 : i32
    %c0_i32_1 = arith.constant 0 : i32
    return %arg0, %c0_i32, %c0_i32_0 : i32, i32, i32
  }
  func.func @transform_1(%arg0: i32, %arg1: i32) -> (i32, i32, i32) {
    %c0_i32 = arith.constant 0 : i32
    %c0_i32_0 = arith.constant 0 : i32
    %c0_i32_1 = arith.constant 0 : i32
    return %c0_i32, %arg1, %c0_i32_0 : i32, i32, i32
  }
  func.func @transform_2(%arg0: i32, %arg1: i32) -> (i32, i32) {
    %c0_i32 = arith.constant 0 : i32
    %c0_i32_0 = arith.constant 0 : i32
    %c0_i32_1 = arith.constant 0 : i32
    return %c0_i32, %c0_i32_0 : i32, i32
  }
  func.func @transform_3(%arg0: i32, %arg1: i32) -> (i32, i32) {
    %c0_i32 = arith.constant 0 : i32
    %c0_i32_0 = arith.constant 0 : i32
    %c0_i32_1 = arith.constant 0 : i32
    return %c0_i32, %c0_i32_0 : i32, i32
  }
  func.func @transform_4(%arg0: i32, %arg1: i32) -> (i32, i32, i32) {
    %c0_i32 = arith.constant 0 : i32
    %c0_i32_0 = arith.constant 0 : i32
    return %arg0, %arg1, %c0_i32 : i32, i32, i32
  }
}

</mosaic_0001>

<llo_original>
// kernel: tpu_custom_call.1
$region0: #{tpu_custom_call.1}
  #allocation0 [shape = 'u32[]', space=smem, size = 0x4, offset = 0x4, fixed_abs, tag = 'smem constant byte address 0x4 - core index']
  #allocation1 [shape = 'u32[144,128]{1,0:T(1,128)}', space=vmem, size = 0x12000, scoped, tag = 'internal scratch']
  #allocation7 [shape = 's32[]', space=sflag, size = 0x4, offset = 0, fixed_abs, tag = 'sflag constant byte address 0x0 - dummy sync flag']
  %s0 = inlined_call_operand.vmem [shape: bf16[2,16,64], index: 0, kind: input, shape index: {}]
  %s1 = inlined_call_operand.vmem [shape: bf16[3,32,16], index: 1, kind: input, shape index: {}]
  %s2 = inlined_call_operand.hbm [shape: bf16[192,256], index: 2, kind: input, shape index: {}]
  %s3 = inlined_call_operand.vmem [shape: f32[1,256], index: 3, kind: input, shape index: {}]
  %s4 = inlined_call_operand.hbm [shape: f32[2,32,256], index: 4, kind: output, shape index: {}]
  %s5 = sld [smem:[#allocation0]]
  $region94: #{tpu_custom_call.1} parent=0
    _
  %s7 = ssub.s32 1, %s5
  %s8 = scalar_select 0, %s7, %s5
  $region1: #{tpu_custom_call.1} parent=0
    #allocation2 [shape = 'u8[24576]{0}', space=vmem, size = 0x6000, scoped, tag = 'input window, operand 1']
    #allocation3 [shape = 'u8[98304]{0}', space=vmem, size = 0x18000, scoped, tag = 'input window, operand 2, single buffered']
    #allocation4 [shape = 's32[2]{0}', space=sflag, size = 0x8, scoped, tag = 'scoped memory for tpu_custom_call.1']
    #allocation5 [shape = 's32[2]{0}', space=sflag, size = 0x8, scoped, tag = 'scoped memory for tpu_custom_call.1']
    #allocation6 [shape = 'u8[65536]{0}', space=vmem, size = 0x10000, scoped, tag = 'output window, operand 0']
    %9 = vsyncpa [#allocation4], 0
    %10 = vsyncpa [#allocation5], 0
    %s11 = scalar_lea.sflag [#allocation5], 1
    %12 = vsyncpa %s11, 0
    loop: start=0, step=1, limit=4
    $region2: #{tpu_custom_call.1} parent=1 // loop_pre_header
      _
    $region3: #{tpu_custom_call.1} parent=1 // loop_header
      %s14 = sphi 0, %s18
      %p15 = scmp.ge.s32.totalorder %s14, 4
      %s21 = sphi 0, %s33
      %s22 = sphi 0, %s29
      %s23 = sphi 0, %s21
      %s24 = sphi 0, %s22
      %s25 = sphi 0, %s23
      %s26 = sphi 0, %s24
      %s36 = sphi 0, %s38
      %s39 = sphi 0, %s36
      %s40 = sphi 0, %s39
      %s56 = sphi 0, %s40
      %s62 = sphi 0, %s64
      %s65 = sphi 0, %s62
      %s66 = sphi 0, %s65
      %s82 = sphi 0, %s66
      %s86 = sphi 0, %s86
      %s88 = sphi 0, %s86
      %s89 = sphi 0, %s88
      %s103 = sphi 0, %s89
      %s107 = sphi 0, %s107
      %s109 = sphi 0, %s107
      %s110 = sphi 0, %s109
      %s124 = sphi 0, %s110
      %s132 = sphi 0, %s134
      %s135 = sphi 0, %s132
      %s136 = sphi 0, %s135
      %s152 = sphi 0, %s136
    $region4: #{tpu_custom_call.1} parent=1 // loop_header_branch
      %17 = sbr.rel (%p15) target = $region8
    $region5: #{tpu_custom_call.1} parent=1 // loop_body
      %s19 = ssub.s32 %s14, 1
      %s20 = ssub.s32 %s14, 2
      %s27 = sadd.s32 1, %s22
      %p28 = scmp.ge.s32.totalorder %s27, 2
      %s29 = scalar_select %p28, 0, %s27
      %s30 = sadd.s32 1, %s21
      %s31 = scalar_select %p28, %s30, %s21
      %p32 = scmp.ge.s32.totalorder %s31, 1
      %s33 = scalar_select %p32, 0, %s31
      %s34 = ssub.s32 %s21, %s33
      %p35 = scmp.eq.s32.totalorder %s34, 0
      %s37 = sadd.s32 %s36, 1
      %s38 = scalar_select %p35, %s36, %s37
      %p41 = pneg %p35
      %p42 = scmp.eq.s32.totalorder %s14, 1
      %p43 = por %p41, %p42
      %p44 = scmp.ne.s32.totalorder %s36, %s39
      %p45 = scmp.eq.s32.totalorder %s14, 0
      %p46 = por %p44, %p45
      %p47 = scmp.ne.s32.totalorder %s36, %s39
      %p48 = scmp.eq.s32.totalorder %s19, 1
      %p49 = por %p47, %p48
      %p50 = scmp.ne.s32.totalorder %s39, %s40
      %p51 = scmp.eq.s32.totalorder %s19, 0
      %p52 = por %p50, %p51
      %p53 = scmp.ne.s32.totalorder %s39, %s40
      %p54 = scmp.eq.s32.totalorder %s20, 1
      %p55 = por %p53, %p54
      %p57 = scmp.ne.s32.totalorder %s40, %s56
      %p58 = scmp.eq.s32.totalorder %s20, 0
      %p59 = por %p57, %p58
      %s60 = ssub.s32 %s22, %s29
      %p61 = scmp.eq.s32.totalorder %s60, 0
      %s63 = sadd.s32 %s62, 1
      %s64 = scalar_select %p61, %s62, %s63
      %p67 = pneg %p61
      %p68 = scmp.eq.s32.totalorder %s14, 1
      %p69 = por %p67, %p68
      %p70 = scmp.ne.s32.totalorder %s62, %s65
      %p71 = scmp.eq.s32.totalorder %s14, 0
      %p72 = por %p70, %p71
      %p73 = scmp.ne.s32.totalorder %s62, %s65
      %p74 = scmp.eq.s32.totalorder %s19, 1
      %p75 = por %p73, %p74
      %p76 = scmp.ne.s32.totalorder %s65, %s66
      %p77 = scmp.eq.s32.totalorder %s19, 0
      %p78 = por %p76, %p77
      %p79 = scmp.ne.s32.totalorder %s65, %s66
      %p80 = scmp.eq.s32.totalorder %s20, 1
      %p81 = por %p79, %p80
      %p83 = scmp.ne.s32.totalorder %s66, %s82
      %p84 = scmp.eq.s32.totalorder %s20, 0
      %p85 = por %p83, %p84
      %s87 = sadd.s32 %s86, 1
      %p90 = scmp.eq.s32.totalorder %s14, 1
      %p91 = scmp.ne.s32.totalorder %s86, %s88
      %p92 = scmp.eq.s32.totalorder %s14, 0
      %p93 = por %p91, %p92
      %p94 = scmp.ne.s32.totalorder %s86, %s88
      %p95 = scmp.eq.s32.totalorder %s19, 1
      %p96 = por %p94, %p95
      %p97 = scmp.ne.s32.totalorder %s88, %s89
      %p98 = scmp.eq.s32.totalorder %s19, 0
      %p99 = por %p97, %p98
      %p100 = scmp.ne.s32.totalorder %s88, %s89
      %p101 = scmp.eq.s32.totalorder %s20, 1
      %p102 = por %p100, %p101
      %p104 = scmp.ne.s32.totalorder %s89, %s103
      %p105 = scmp.eq.s32.totalorder %s20, 0
      %p106 = por %p104, %p105
      %s108 = sadd.s32 %s107, 1
      %p111 = scmp.eq.s32.totalorder %s14, 1
      %p112 = scmp.ne.s32.totalorder %s107, %s109
      %p113 = scmp.eq.s32.totalorder %s14, 0
      %p114 = por %p112, %p113
      %p115 = scmp.ne.s32.totalorder %s107, %s109
      %p116 = scmp.eq.s32.totalorder %s19, 1
      %p117 = por %p115, %p116
      %p118 = scmp.ne.s32.totalorder %s109, %s110
      %p119 = scmp.eq.s32.totalorder %s19, 0
      %p120 = por %p118, %p119
      %p121 = scmp.ne.s32.totalorder %s109, %s110
      %p122 = scmp.eq.s32.totalorder %s20, 1
      %p123 = por %p121, %p122
      %p125 = scmp.ne.s32.totalorder %s110, %s124
      %p126 = scmp.eq.s32.totalorder %s20, 0
      %p127 = por %p125, %p126
      %s128 = ssub.s32 %s21, %s33
      %s129 = ssub.s32 %s22, %s29
      %s130 = sor.u32 %s128, %s129
      %p131 = scmp.eq.s32.totalorder %s130, 0
      %s133 = sadd.s32 %s132, 1
      %s134 = scalar_select %p131, %s132, %s133
      %p137 = pneg %p131
      %p138 = scmp.eq.s32.totalorder %s14, 1
      %p139 = por %p137, %p138
      %p140 = scmp.ne.s32.totalorder %s132, %s135
      %p141 = scmp.eq.s32.totalorder %s14, 0
      %p142 = por %p140, %p141
      %p143 = scmp.ne.s32.totalorder %s132, %s135
      %p144 = scmp.eq.s32.totalorder %s19, 1
      %p145 = por %p143, %p144
      %p146 = scmp.ne.s32.totalorder %s135, %s136
      %p147 = scmp.eq.s32.totalorder %s19, 0
      %p148 = por %p146, %p147
      %p149 = scmp.ne.s32.totalorder %s135, %s136
      %p150 = scmp.eq.s32.totalorder %s20, 1
      %p151 = por %p149, %p150
      %p153 = scmp.ne.s32.totalorder %s136, %s152
      %p154 = scmp.eq.s32.totalorder %s20, 0
      %p155 = por %p153, %p154
      %p156 = scmp.le.s32.totalorder 1, %s14
      %p157 = scmp.lt.s32.totalorder %s14, 3
      %p158 = pnand %p156, %p157
      %p159 = pneg %p158
      // Predicated region
      $region9: #{tpu_custom_call.1} parent=5 // pred_check
        _
      $region10: #{tpu_custom_call.1} parent=5 // pred_check_branch
        %161 = sbr.rel (%p158) target = $region12
      $region11: #{tpu_custom_call.1} parent=5 // pred_region
        %s162 = ssub.s32 %s14, 1
        // Predicated region
        $region13: #{tpu_custom_call.1} parent=11 // pred_check
          %p163 = pneg %p52
        $region14: #{tpu_custom_call.1} parent=11 // pred_check_branch
          %165 = sbr.rel (%p163) target = $region16
        $region15: #{tpu_custom_call.1} parent=11 // pred_region
          %s166 = smul.u32 2, %s23
          %p167 = scmp.lt.s32.totalorder %s166, 1
          %s168 = scalar_select %p167, %s166, 1
          %s169 = smul.addr %s168, 2
          %s170 = smul.addr %s169, 4
          %s171 = scalar_lea.vmem %s0, %s170
          %s172 = smul.u32 2, %s23
        $region16: #{tpu_custom_call.1} parent=11 // pred_fallthru
          _
        // Predicated region
        $region17: #{tpu_custom_call.1} parent=11 // pred_check
          %p173 = pneg %p99
        $region18: #{tpu_custom_call.1} parent=11 // pred_check_branch
          %175 = sbr.rel (%p173) target = $region20
        $region19: #{tpu_custom_call.1} parent=11 // pred_region
          %s177 = ssub.s32 3072, 3072
          %178 = vsyncadd [#allocation4], %s177
          %s179 = sshll.u32 [#allocation3], 4
          %s180 = int_to_ptr.vmem [resolvable:$true] %s179
          %185 = dma.hbm_to_vmem [thread:$0]  %s2, 3072, %s180, [#allocation4], 128, 128, 8
        $region20: #{tpu_custom_call.1} parent=11 // pred_fallthru
          _
        // Predicated region
        $region21: #{tpu_custom_call.1} parent=11 // pred_check
          %p186 = pneg %p120
        $region22: #{tpu_custom_call.1} parent=11 // pred_check_branch
          %188 = sbr.rel (%p186) target = $region24
        $region23: #{tpu_custom_call.1} parent=11 // pred_region
          _
        $region24: #{tpu_custom_call.1} parent=11 // pred_fallthru
          _
      $region12: #{tpu_custom_call.1} parent=5 // pred_fallthru
        _
      %p189 = scmp.lt.s32.totalorder %s14, 2
      // Predicated region
      $region25: #{tpu_custom_call.1} parent=5 // pred_check
        %p190 = pneg %p189
      $region26: #{tpu_custom_call.1} parent=5 // pred_check_branch
        %192 = sbr.rel (%p190) target = $region28
      $region27: #{tpu_custom_call.1} parent=5 // pred_region
        // Predicated region
        $region29: #{tpu_custom_call.1} parent=27 // pred_check
          %p193 = pneg %p72
        $region30: #{tpu_custom_call.1} parent=27 // pred_check_branch
          %195 = sbr.rel (%p193) target = $region32
        $region31: #{tpu_custom_call.1} parent=27 // pred_region
          %s196 = sand.u32 %s62, 1
          %s197 = sand.u32 %s62, 1
          %s198 = smul.addr %s197, 24
          %s199 = scalar_lea.vmem [#allocation2], %s198
          %s200 = smul.u32 2, %s22
          %s201 = smul.addr %s200, 4
          %s202 = scalar_lea.vmem %s1, %s201
          // Predicated region
          $region33: #{tpu_custom_call.1} parent=31 // pred_check
            _
          $region34: #{tpu_custom_call.1} parent=31 // pred_check_branch
            %204 = sbr.rel (0) target = $region36
          $region35: #{tpu_custom_call.1} parent=31 // pred_region
            // Predicated region
            $region37: #{tpu_custom_call.1} parent=35 // pred_check
              _
            $region38: #{tpu_custom_call.1} parent=35 // pred_check_branch
              %206 = sbr.rel target = $region40
            $region39: #{tpu_custom_call.1} parent=35 // pred_region
              // Predicated region
              $region52: #{tpu_custom_call.1} parent=39 // pred_check
                _
              $region53: #{tpu_custom_call.1} parent=39 // pred_check_branch
                %232 = sbr.rel (0) target = $region55
              $region54: #{tpu_custom_call.1} parent=39 // pred_region
                loop: start=0, step=1, limit=1
                $region56: #{tpu_custom_call.1} parent=54 // loop_pre_header
                  _
                $region57: #{tpu_custom_call.1} parent=54 // loop_header
                  %s234 = sphi 0, %s238
                  %p235 = scmp.ge.s32.totalorder %s234, 1
                  %s239 = sphi %s202, %s202
                  %s240 = sphi %s199, %s199
                $region58: #{tpu_custom_call.1} parent=54 // loop_header_branch
                  %237 = sbr.rel (%p235) target = $region62
                $region59: #{tpu_custom_call.1} parent=54 // loop_body
                  _
                $region60: #{tpu_custom_call.1} parent=54 // loop_footer
                  %s238 = sadd.s32 1, %s234
                $region61: #{tpu_custom_call.1} parent=54 // loop_footer_branch
                  %233 = sbr.rel target = $region57
                $region62: #{tpu_custom_call.1} parent=54 // loop_exit
                  _
                %s242 = ssub.s32 16, 1
                loop: start=0, step=1, limit=1
                $region63: #{tpu_custom_call.1} parent=54 // loop_pre_header
                  _
                $region64: #{tpu_custom_call.1} parent=54 // loop_header
                  %s244 = sphi 0, %s248
                  %p245 = scmp.ge.s32.totalorder %s244, 1
                  %s249 = sphi %s202, %s202
                  %s250 = sphi %s199, %s199
                $region65: #{tpu_custom_call.1} parent=54 // loop_header_branch
                  %247 = sbr.rel (%p245) target = $region69
                $region66: #{tpu_custom_call.1} parent=54 // loop_body
                  %v251 = vld [vmem:[%s249] sm:%s242]
                  %252 = vst [vmem:[%s250] sm:%s242] %v251
                  %v253 = vld [vmem:[%s249 + $0x4] sm:%s242]
                  %254 = vst [vmem:[%s250 + $0x4] sm:%s242] %v253
                  %v255 = vld [vmem:[%s249 + $0x10] sm:%s242]
                  %256 = vst [vmem:[%s250 + $0x8] sm:%s242] %v255
                  %v257 = vld [vmem:[%s249 + $0x14] sm:%s242]
                  %258 = vst [vmem:[%s250 + $0xc] sm:%s242] %v257
                  %v259 = vld [vmem:[%s249 + $0x20] sm:%s242]
                  %260 = vst [vmem:[%s250 + $0x10] sm:%s242] %v259
                  %v261 = vld [vmem:[%s249 + $0x24] sm:%s242]
                  %262 = vst [vmem:[%s250 + $0x14] sm:%s242] %v261
                $region67: #{tpu_custom_call.1} parent=54 // loop_footer
                  %s248 = sadd.s32 1, %s244
                $region68: #{tpu_custom_call.1} parent=54 // loop_footer_branch
                  %243 = sbr.rel target = $region64
                $region69: #{tpu_custom_call.1} parent=54 // loop_exit
                  _
              $region55: #{tpu_custom_call.1} parent=39 // pred_fallthru
                _
            $region40: #{tpu_custom_call.1} parent=35 // pred_fallthru
              _
            // Predicated region
            $region41: #{tpu_custom_call.1} parent=35 // pred_check
              _
            $region42: #{tpu_custom_call.1} parent=35 // pred_check_branch
              %208 = sbr.rel (0) target = $region44
            $region43: #{tpu_custom_call.1} parent=35 // pred_region
              %s210 = ssub.s32 16, 1
              loop: start=0, step=1, limit=1
              $region45: #{tpu_custom_call.1} parent=43 // loop_pre_header
                _
              $region46: #{tpu_custom_call.1} parent=43 // loop_header
                %s212 = sphi 0, %s216
                %p213 = scmp.ge.s32.totalorder %s212, 1
                %s217 = sphi %s202, %s202
                %s218 = sphi %s199, %s199
              $region47: #{tpu_custom_call.1} parent=43 // loop_header_branch
                %215 = sbr.rel (%p213) target = $region51
              $region48: #{tpu_custom_call.1} parent=43 // loop_body
                %v219 = vld [vmem:[%s217] sm:%s210]
                %220 = vst [vmem:[%s218] sm:%s210] %v219
                %v221 = vld [vmem:[%s217 + $0x4] sm:%s210]
                %222 = vst [vmem:[%s218 + $0x4] sm:%s210] %v221
                %v223 = vld [vmem:[%s217 + $0x10] sm:%s210]
                %224 = vst [vmem:[%s218 + $0x8] sm:%s210] %v223
                %v225 = vld [vmem:[%s217 + $0x14] sm:%s210]
                %226 = vst [vmem:[%s218 + $0xc] sm:%s210] %v225
                %v227 = vld [vmem:[%s217 + $0x20] sm:%s210]
                %228 = vst [vmem:[%s218 + $0x10] sm:%s210] %v227
                %v229 = vld [vmem:[%s217 + $0x24] sm:%s210]
                %230 = vst [vmem:[%s218 + $0x14] sm:%s210] %v229
              $region49: #{tpu_custom_call.1} parent=43 // loop_footer
                %s216 = sadd.s32 1, %s212
              $region50: #{tpu_custom_call.1} parent=43 // loop_footer_branch
                %211 = sbr.rel target = $region46
              $region51: #{tpu_custom_call.1} parent=43 // loop_exit
                _
            $region44: #{tpu_custom_call.1} parent=35 // pred_fallthru
              _
          $region36: #{tpu_custom_call.1} parent=31 // pred_fallthru
            _
          %263 = vnop
        $region32: #{tpu_custom_call.1} parent=27 // pred_fallthru
          _
      $region28: #{tpu_custom_call.1} parent=5 // pred_fallthru
        _
      %p264 = scmp.le.s32.totalorder 1, %s14
      %p265 = scmp.lt.s32.totalorder %s14, 3
      %p266 = pnand %p264, %p265
      %p267 = pneg %p266
      // Predicated region
      $region70: #{tpu_custom_call.1} parent=5 // pred_check
        _
      $region71: #{tpu_custom_call.1} parent=5 // pred_check_branch
        %269 = sbr.rel (%p266) target = $region73
      $region72: #{tpu_custom_call.1} parent=5 // pred_region
        %s270 = ssub.s32 %s14, 1
        %s271 = sand.u32 %s65, 1
        %s272 = sand.u32 %s65, 1
        %s273 = smul.addr %s272, 24
        %s274 = scalar_lea.vmem [#allocation2], %s273
        // Predicated region
        $region74: #{tpu_custom_call.1} parent=72 // pred_check
          %p275 = pneg %p78
        $region75: #{tpu_custom_call.1} parent=72 // pred_check_branch
          %277 = sbr.rel (%p275) target = $region77
        $region76: #{tpu_custom_call.1} parent=72 // pred_region
          _
        $region77: #{tpu_custom_call.1} parent=72 // pred_fallthru
          _
        // Predicated region
        $region78: #{tpu_custom_call.1} parent=72 // pred_check
          %p278 = pneg %p99
        $region79: #{tpu_custom_call.1} parent=72 // pred_check_branch
          %280 = sbr.rel (%p278) target = $region81
        $region80: #{tpu_custom_call.1} parent=72 // pred_region
          %281 = dma.done [#allocation4], 3072
        $region81: #{tpu_custom_call.1} parent=72 // pred_fallthru
          _
        %s282 = smul.u32 2, %s23
        %p283 = scmp.lt.s32.totalorder %s282, 1
        %s284 = scalar_select %p283, %s282, 1
        %s285 = smul.addr %s284, 2
        %s286 = smul.addr %s285, 4
        %s287 = scalar_lea.vmem %s0, %s286
        %p288 = pneg %p52
        %p289 = pneg %p49
        %s290 = sand.u32 %s65, 1
        %s291 = sand.u32 %s65, 1
        %s292 = smul.addr %s291, 24
        %s293 = scalar_lea.vmem [#allocation2], %s292
        %p294 = pneg %p78
        %p295 = pneg %p75
        %p296 = pneg %p99
        %p297 = pneg %p96
        %p298 = pneg %p120
        %p299 = pneg %p117
        %p300 = pneg %p148
        %p301 = pneg %p145
        %s302 = sand.u32 %s135, 1
        %s303 = scalar_lea.sflag [#allocation5], %s302
        %s304 = sand.u32 %s135, 1
        %s305 = smul.addr %s304, 64
        %s306 = scalar_lea.vmem [#allocation6], %s305
        %s307 = smul.u32 2, %s23
        %p308 = scmp.lt.s32.totalorder %s307, 1
        %s309 = scalar_select %p308, %s307, 1
        %s310 = smul.addr %s309, 2
        %s311 = smul.addr %s310, 4
        %s312 = scalar_lea.vmem %s0, %s311
        %s313 = smul.u32 2, %s23
        %s314 = smul.u32 2, %s24
        %s315 = smul.u32 2, %s23
        %s316 = smul.u32 2, %s24
        %v318 = vld [vmem:[%s274] sm:$0xf]
        %v319 = vld [vmem:[%s274 + $0x4] sm:$0xf]
        %v320 = vld [vmem:[%s274 + $0x8] sm:$0xf]
        %v321 = vld [vmem:[%s274 + $0xc] sm:$0xf]
        %v322 = vld [vmem:[%s274 + $0x10] sm:$0xf]
        %v323 = vld [vmem:[%s274 + $0x14] sm:$0xf]
        %v324 = vld [vmem:[#allocation3] sm:$0xff]
        %v325 = vld [vmem:[#allocation3 + $0x8] sm:$0xff]
        %v326 = vld [vmem:[#allocation3 + $0x10] sm:$0xff]
        %v327 = vld [vmem:[#allocation3 + $0x18] sm:$0xff]
        %v328 = vld [vmem:[#allocation3 + $0x20] sm:$0xff]
        %v329 = vld [vmem:[#allocation3 + $0x28] sm:$0xff]
        %v330 = vld [vmem:[#allocation3 + $0x30] sm:$0xff]
        %v331 = vld [vmem:[#allocation3 + $0x38] sm:$0xff]
        %v332 = vld [vmem:[#allocation3 + $0x40] sm:$0xff]
        %v333 = vld [vmem:[#allocation3 + $0x48] sm:$0xff]
        %v334 = vld [vmem:[#allocation3 + $0x50] sm:$0xff]
        %v335 = vld [vmem:[#allocation3 + $0x58] sm:$0xff]
        %v336 = vld [vmem:[#allocation3 + $0x60] sm:$0xff]
        %v337 = vld [vmem:[#allocation3 + $0x68] sm:$0xff]
        %v338 = vld [vmem:[#allocation3 + $0x70] sm:$0xff]
        %v339 = vld [vmem:[#allocation3 + $0x78] sm:$0xff]
        %v340 = vld [vmem:[#allocation3 + $0x80] sm:$0xff]
        %v341 = vld [vmem:[#allocation3 + $0x88] sm:$0xff]
        %v342 = vld [vmem:[#allocation3 + $0x90] sm:$0xff]
        %v343 = vld [vmem:[#allocation3 + $0x98] sm:$0xff]
        %v344 = vld [vmem:[#allocation3 + $0xa0] sm:$0xff]
        %v345 = vld [vmem:[#allocation3 + $0xa8] sm:$0xff]
        %v346 = vld [vmem:[#allocation3 + $0xb0] sm:$0xff]
        %v347 = vld [vmem:[#allocation3 + $0xb8] sm:$0xff]
        %v348 = vld [vmem:[%s3] sm:$0x3]
        %v349 = vld [vmem:[%s312] sm:$0xf]
        %v350 = vld [vmem:[%s312 + $0x4] sm:$0xf]
        %v357 = vunpack.c.l.b16 %v318
        %v358 = vunpack.c.l.b16 %v319
        %v359 = vunpack.c.l.b16 %v320
        %v360 = vunpack.c.l.b16 %v321
        %v361 = vunpack.c.l.b16 %v322
        %v362 = vunpack.c.l.b16 %v323
        %v363 = vpack.c.b16 %v358, %v357
        %v364 = vpack.c.b16 %v360, %v359
        %v365 = vpack.c.b16 %v362, %v361
        %v368 = vunpack.c.l.b16 %v349
        %v369 = vunpack.c.l.b16 %v350
        %v370 = vpack.c.b16 %v369, %v368
        %vm372 = vcmask 130048
        %v374 = vsel %vm372, %v363, 0
        %v377 = vsel %vm372, %v364, 0
        %v380 = vsel %vm372, %v365, 0
        %382 = vmatprep.subr.bf16.mxu0 0
        %383 = vmatpush1.bf16.msra.mxu0 0
        %384 = vmatprep.subr.bf16.mxu0 0
        %385 = vmatpush1.bf16.msra.mxu0 0
        %386 = vmatprep.subr.bf16.mxu0 0
        %387 = vmatpush1.bf16.msra.mxu0 0
        %388 = vmatprep.subr.bf16.mxu0 0
        %389 = vmatpush1.bf16.msra.mxu0 0
        %390 = vmatprep.subr.bf16.mxu0 0
        %391 = vmatpush1.bf16.msra.mxu0 0
        %392 = vmatprep.subr.bf16.mxu0 0
        %393 = vmatpush1.bf16.msra.mxu0 0
        %394 = vmatprep.subr.bf16.mxu0 0
        %395 = vmatpush1.bf16.msra.mxu0 0
        %396 = vmatprep.subr.bf16.mxu0 0
        %397 = vmatpush1.bf16.msra.mxu0 %v370
        %398 = vmatprep.subr.bf16.mxu0 0
        %399 = vmatpush2.bf16.msra.mxu0 0
        %400 = vmatprep.subr.bf16.mxu0 0
        %401 = vmatpush2.bf16.msra.mxu0 0
        %402 = vmatprep.subr.bf16.mxu0 0
        %403 = vmatpush2.bf16.msra.mxu0 0
        %404 = vmatprep.subr.bf16.mxu0 0
        %405 = vmatpush2.bf16.msra.mxu0 0
        %406 = vmatprep.subr.bf16.mxu0 0
        %407 = vmatpush2.bf16.msra.mxu0 0
        %408 = vmatprep.subr.bf16.mxu0 0
        %409 = vmatpush2.bf16.msra.mxu0 0
        %410 = vmatprep.subr.bf16.mxu0 0
        %411 = vmatpush2.bf16.msra.mxu0 0
        %412 = vmatprep.subr.bf16.mxu0 0
        %413 = vmatpush2.bf16.msra.mxu0 0
        %414 = vmatprep.mubr.bf16.mxu0 0
        %415 = vmatmul.mubr.bf16.gmra.mxu0 %v374
        %v416 = vpop.f32.mrf.mxu0
        %v417 = vadd.f32 0.0, %v416
        %v418 = vpop.f32.mrf.mxu0
        %v419 = vpop.f32.mrf.mxu0
        %v420 = vadd.f32 0.0, %v419
        %v421 = vpop.f32.mrf.mxu0
        %422 = vmatprep.mubr.bf16.mxu0 0
        %423 = vmatmul.mubr.bf16.gmra.mxu0 %v377
        %v424 = vpop.f32.mrf.mxu0
        %v425 = vadd.f32 0.0, %v424
        %v426 = vpop.f32.mrf.mxu0
        %v427 = vpop.f32.mrf.mxu0
        %v428 = vadd.f32 0.0, %v427
        %v429 = vpop.f32.mrf.mxu0
        %430 = vmatprep.mubr.bf16.mxu0 0
        %431 = vmatmul.mubr.bf16.gmra.mxu0 %v380
        %v432 = vpop.f32.mrf.mxu0
        %v433 = vadd.f32 0.0, %v432
        %v434 = vpop.f32.mrf.mxu0
        %v435 = vpop.f32.mrf.mxu0
        %v436 = vadd.f32 0.0, %v435
        %v437 = vpop.f32.mrf.mxu0
        %438 = vdwg.mxu0
        %441 = vrot.lane.b32.xlu0 %v425, 64
        %v442 = vpop.permute.xlu0 %441
        %443 = vrot.lane.b32.xlu0 %v428, 64
        %v444 = vpop.permute.xlu0 %443
        %vm447 = vcmask 523264
        %v448 = vsel %vm447, %v417, %v442
        %v449 = vsel %vm447, %v420, %v444
        %v450 = vpack.c.bf16 %v449, %v448
        %v451 = vpack.c.bf16 %v436, %v433
        %v453 = vlaneseq
        %v454 = vshrl.u32 %v453, 7
        %v455 = vsub.s32 0, %v454
        %v456 = vrot.slane %v348, %v455
        %v457 = vlaneseq
        %v458 = vshrl.u32 %v457, 7
        %v459 = vsub.s32 1, %v458
        %v460 = vrot.slane %v348, %v459
        %v487 = vunpack.c.l.b16 %v324
        %v488 = vunpack.c.h.b16 %v324
        %v489 = vunpack.c.l.b16 %v325
        %v490 = vunpack.c.h.b16 %v325
        %v491 = vunpack.c.l.b16 %v326
        %v492 = vunpack.c.h.b16 %v326
        %v493 = vunpack.c.l.b16 %v327
        %v494 = vunpack.c.h.b16 %v327
        %v495 = vunpack.c.l.b16 %v328
        %v496 = vunpack.c.h.b16 %v328
        %v497 = vunpack.c.l.b16 %v329
        %v498 = vunpack.c.h.b16 %v329
        %v499 = vunpack.c.l.b16 %v330
        %v500 = vunpack.c.h.b16 %v330
        %v501 = vunpack.c.l.b16 %v331
        %v502 = vunpack.c.h.b16 %v331
        %v503 = vunpack.c.l.b16 %v332
        %v504 = vunpack.c.h.b16 %v332
        %v505 = vunpack.c.l.b16 %v333
        %v506 = vunpack.c.h.b16 %v333
        %v507 = vunpack.c.l.b16 %v334
        %v508 = vunpack.c.h.b16 %v334
        %v509 = vunpack.c.l.b16 %v335
        %v510 = vunpack.c.h.b16 %v335
        %v511 = vunpack.c.l.b16 %v336
        %v512 = vunpack.c.h.b16 %v336
        %v513 = vunpack.c.l.b16 %v337
        %v514 = vunpack.c.h.b16 %v337
        %v515 = vunpack.c.l.b16 %v338
        %v516 = vunpack.c.h.b16 %v338
        %v517 = vunpack.c.l.b16 %v339
        %v518 = vunpack.c.h.b16 %v339
        %v519 = vunpack.c.l.b16 %v340
        %v520 = vunpack.c.h.b16 %v340
        %v521 = vunpack.c.l.b16 %v341
        %v522 = vunpack.c.h.b16 %v341
        %v523 = vunpack.c.l.b16 %v342
        %v524 = vunpack.c.h.b16 %v342
        %v525 = vunpack.c.l.b16 %v343
        %v526 = vunpack.c.h.b16 %v343
        %v527 = vunpack.c.l.b16 %v344
        %v528 = vunpack.c.h.b16 %v344
        %v529 = vunpack.c.l.b16 %v345
        %v530 = vunpack.c.h.b16 %v345
        %v531 = vunpack.c.l.b16 %v346
        %v532 = vunpack.c.h.b16 %v346
        %v533 = vunpack.c.l.b16 %v347
        %v534 = vunpack.c.h.b16 %v347
        %v535 = vpack.c.b16 %v489, %v487
        %v536 = vpack.c.b16 %v490, %v488
        %v537 = vpack.c.b16 %v493, %v491
        %v538 = vpack.c.b16 %v494, %v492
        %v539 = vpack.c.b16 %v497, %v495
        %v540 = vpack.c.b16 %v498, %v496
        %v541 = vpack.c.b16 %v501, %v499
        %v542 = vpack.c.b16 %v502, %v500
        %v543 = vpack.c.b16 %v505, %v503
        %v544 = vpack.c.b16 %v506, %v504
        %v545 = vpack.c.b16 %v509, %v507
        %v546 = vpack.c.b16 %v510, %v508
        %v547 = vpack.c.b16 %v513, %v511
        %v548 = vpack.c.b16 %v514, %v512
        %v549 = vpack.c.b16 %v517, %v515
        %v550 = vpack.c.b16 %v518, %v516
        %v551 = vpack.c.b16 %v521, %v519
        %v552 = vpack.c.b16 %v522, %v520
        %v553 = vpack.c.b16 %v525, %v523
        %v554 = vpack.c.b16 %v526, %v524
        %v555 = vpack.c.b16 %v529, %v527
        %v556 = vpack.c.b16 %v530, %v528
        %v557 = vpack.c.b16 %v533, %v531
        %v558 = vpack.c.b16 %v534, %v532
        %v584 = vsel %vm447, %v451, 0
        %586 = vmatprep.subr.bf16.mxu0 %v550
        %587 = vmatpush1.bf16.msra.mxu0 %v549
        %588 = vmatprep.subr.bf16.mxu0 %v548
        %589 = vmatpush1.bf16.msra.mxu0 %v547
        %590 = vmatprep.subr.bf16.mxu0 %v546
        %591 = vmatpush1.bf16.msra.mxu0 %v545
        %592 = vmatprep.subr.bf16.mxu0 %v544
        %593 = vmatpush1.bf16.msra.mxu0 %v543
        %594 = vmatprep.subr.bf16.mxu0 %v542
        %595 = vmatpush1.bf16.msra.mxu0 %v541
        %596 = vmatprep.subr.bf16.mxu0 %v540
        %597 = vmatpush1.bf16.msra.mxu0 %v539
        %598 = vmatprep.subr.bf16.mxu0 %v538
        %599 = vmatpush1.bf16.msra.mxu0 %v537
        %600 = vmatprep.subr.bf16.mxu0 %v536
        %601 = vmatpush1.bf16.msra.mxu0 %v535
        %602 = vmatprep.subr.bf16.mxu0 0
        %603 = vmatpush2.bf16.msra.mxu0 0
        %604 = vmatprep.subr.bf16.mxu0 0
        %605 = vmatpush2.bf16.msra.mxu0 0
        %606 = vmatprep.subr.bf16.mxu0 0
        %607 = vmatpush2.bf16.msra.mxu0 0
        %608 = vmatprep.subr.bf16.mxu0 0
        %609 = vmatpush2.bf16.msra.mxu0 0
        %610 = vmatprep.subr.bf16.mxu0 %v558
        %611 = vmatpush2.bf16.msra.mxu0 %v557
        %612 = vmatprep.subr.bf16.mxu0 %v556
        %613 = vmatpush2.bf16.msra.mxu0 %v555
        %614 = vmatprep.subr.bf16.mxu0 %v554
        %615 = vmatpush2.bf16.msra.mxu0 %v553
        %616 = vmatprep.subr.bf16.mxu0 %v552
        %617 = vmatpush2.bf16.msra.mxu0 %v551
        %618 = vmatprep.mubr.bf16.mxu0 %v584
        %619 = vmatmul.mubr.bf16.gmra.mxu0 %v450
        %v620 = vpop.f32.mrf.mxu0
        %v621 = vadd.f32 %v456, %v620
        %v622 = vpop.f32.mrf.mxu0
        %v623 = vadd.f32 %v460, %v622
        %v624 = vpop.f32.mrf.mxu0
        %v625 = vadd.f32 %v456, %v624
        %v626 = vpop.f32.mrf.mxu0
        %v627 = vadd.f32 %v460, %v626
        %628 = vdwg.mxu0
        %vm629 = vcmp.ge.f32.partialorder %v621, 0.0
        %vm630 = vcmp.ge.f32.partialorder %v623, 0.0
        %vm631 = vcmp.ge.f32.partialorder %v625, 0.0
        %vm632 = vcmp.ge.f32.partialorder %v627, 0.0
        %v633 = vmul.f32 %v621, 0.1
        %v634 = vmul.f32 %v623, 0.1
        %v635 = vmul.f32 %v625, 0.1
        %v636 = vmul.f32 %v627, 0.1
        %v637 = vsel %vm629, %v621, %v633
        %v638 = vsel %vm630, %v623, %v634
        %v639 = vsel %vm631, %v625, %v635
        %v640 = vsel %vm632, %v627, %v636
        %641 = vst [vmem:[%s306] sm:$0xff] %v637
        %642 = vst [vmem:[%s306 + $0x8] sm:$0xff] %v638
        %643 = vst [vmem:[%s306 + $0x10] sm:$0xff] %v639
        %644 = vst [vmem:[%s306 + $0x18] sm:$0xff] %v640
        %s645 = scalar_lea.vmem %s312, 8
        %v646 = vld [vmem:[%s645] sm:$0xf]
        %v647 = vld [vmem:[%s645 + $0x4] sm:$0xf]
        %v650 = vunpack.c.l.b16 %v646
        %v651 = vunpack.c.l.b16 %v647
        %v652 = vpack.c.b16 %v651, %v650
        %654 = vmatprep.subr.bf16.mxu0 0
        %655 = vmatpush1.bf16.msra.mxu0 0
        %656 = vmatprep.subr.bf16.mxu0 0
        %657 = vmatpush1.bf16.msra.mxu0 0
        %658 = vmatprep.subr.bf16.mxu0 0
        %659 = vmatpush1.bf16.msra.mxu0 0
        %660 = vmatprep.subr.bf16.mxu0 0
        %661 = vmatpush1.bf16.msra.mxu0 0
        %662 = vmatprep.subr.bf16.mxu0 0
        %663 = vmatpush1.bf16.msra.mxu0 0
        %664 = vmatprep.subr.bf16.mxu0 0
        %665 = vmatpush1.bf16.msra.mxu0 0
        %666 = vmatprep.subr.bf16.mxu0 0
        %667 = vmatpush1.bf16.msra.mxu0 0
        %668 = vmatprep.subr.bf16.mxu0 0
        %669 = vmatpush1.bf16.msra.mxu0 %v652
        %670 = vmatprep.subr.bf16.mxu0 0
        %671 = vmatpush2.bf16.msra.mxu0 0
        %672 = vmatprep.subr.bf16.mxu0 0
        %673 = vmatpush2.bf16.msra.mxu0 0
        %674 = vmatprep.subr.bf16.mxu0 0
        %675 = vmatpush2.bf16.msra.mxu0 0
        %676 = vmatprep.subr.bf16.mxu0 0
        %677 = vmatpush2.bf16.msra.mxu0 0
        %678 = vmatprep.subr.bf16.mxu0 0
        %679 = vmatpush2.bf16.msra.mxu0 0
        %680 = vmatprep.subr.bf16.mxu0 0
        %681 = vmatpush2.bf16.msra.mxu0 0
        %682 = vmatprep.subr.bf16.mxu0 0
        %683 = vmatpush2.bf16.msra.mxu0 0
        %684 = vmatprep.subr.bf16.mxu0 0
        %685 = vmatpush2.bf16.msra.mxu0 0
        %686 = vmatprep.mubr.bf16.mxu0 0
        %687 = vmatmul.mubr.bf16.gmra.mxu0 %v374
        %v688 = vpop.f32.mrf.mxu0
        %v689 = vadd.f32 0.0, %v688
        %v690 = vpop.f32.mrf.mxu0
        %v691 = vpop.f32.mrf.mxu0
        %v692 = vadd.f32 0.0, %v691
        %v693 = vpop.f32.mrf.mxu0
        %694 = vmatprep.mubr.bf16.mxu0 0
        %695 = vmatmul.mubr.bf16.gmra.mxu0 %v377
        %v696 = vpop.f32.mrf.mxu0
        %v697 = vadd.f32 0.0, %v696
        %v698 = vpop.f32.mrf.mxu0
        %v699 = vpop.f32.mrf.mxu0
        %v700 = vadd.f32 0.0, %v699
        %v701 = vpop.f32.mrf.mxu0
        %702 = vmatprep.mubr.bf16.mxu0 0
        %703 = vmatmul.mubr.bf16.gmra.mxu0 %v380
        %v704 = vpop.f32.mrf.mxu0
        %v705 = vadd.f32 0.0, %v704
        %v706 = vpop.f32.mrf.mxu0
        %v707 = vpop.f32.mrf.mxu0
        %v708 = vadd.f32 0.0, %v707
        %v709 = vpop.f32.mrf.mxu0
        %710 = vdwg.mxu0
        %713 = vrot.lane.b32.xlu0 %v697, 64
        %v714 = vpop.permute.xlu0 %713
        %715 = vrot.lane.b32.xlu0 %v700, 64
        %v716 = vpop.permute.xlu0 %715
        %v719 = vsel %vm447, %v689, %v714
        %v720 = vsel %vm447, %v692, %v716
        %v721 = vpack.c.bf16 %v720, %v719
        %v722 = vpack.c.bf16 %v708, %v705
        %v724 = vsel %vm447, %v722, 0
        %726 = vmatprep.subr.bf16.mxu0 %v550
        %727 = vmatpush1.bf16.msra.mxu0 %v549
        %728 = vmatprep.subr.bf16.mxu0 %v548
        %729 = vmatpush1.bf16.msra.mxu0 %v547
        %730 = vmatprep.subr.bf16.mxu0 %v546
        %731 = vmatpush1.bf16.msra.mxu0 %v545
        %732 = vmatprep.subr.bf16.mxu0 %v544
        %733 = vmatpush1.bf16.msra.mxu0 %v543
        %734 = vmatprep.subr.bf16.mxu0 %v542
        %735 = vmatpush1.bf16.msra.mxu0 %v541
        %736 = vmatprep.subr.bf16.mxu0 %v540
        %737 = vmatpush1.bf16.msra.mxu0 %v539
        %738 = vmatprep.subr.bf16.mxu0 %v538
        %739 = vmatpush1.bf16.msra.mxu0 %v537
        %740 = vmatprep.subr.bf16.mxu0 %v536
        %741 = vmatpush1.bf16.msra.mxu0 %v535
        %742 = vmatprep.subr.bf16.mxu0 0
        %743 = vmatpush2.bf16.msra.mxu0 0
        %744 = vmatprep.subr.bf16.mxu0 0
        %745 = vmatpush2.bf16.msra.mxu0 0
        %746 = vmatprep.subr.bf16.mxu0 0
        %747 = vmatpush2.bf16.msra.mxu0 0
        %748 = vmatprep.subr.bf16.mxu0 0
        %749 = vmatpush2.bf16.msra.mxu0 0
        %750 = vmatprep.subr.bf16.mxu0 %v558
        %751 = vmatpush2.bf16.msra.mxu0 %v557
        %752 = vmatprep.subr.bf16.mxu0 %v556
        %753 = vmatpush2.bf16.msra.mxu0 %v555
        %754 = vmatprep.subr.bf16.mxu0 %v554
        %755 = vmatpush2.bf16.msra.mxu0 %v553
        %756 = vmatprep.subr.bf16.mxu0 %v552
        %757 = vmatpush2.bf16.msra.mxu0 %v551
        %758 = vmatprep.mubr.bf16.mxu0 %v724
        %759 = vmatmul.mubr.bf16.gmra.mxu0 %v721
        %v760 = vpop.f32.mrf.mxu0
        %v761 = vadd.f32 %v456, %v760
        %v762 = vpop.f32.mrf.mxu0
        %v763 = vadd.f32 %v460, %v762
        %v764 = vpop.f32.mrf.mxu0
        %v765 = vadd.f32 %v456, %v764
        %v766 = vpop.f32.mrf.mxu0
        %v767 = vadd.f32 %v460, %v766
        %768 = vdwg.mxu0
        %vm769 = vcmp.ge.f32.partialorder %v761, 0.0
        %vm770 = vcmp.ge.f32.partialorder %v763, 0.0
        %vm771 = vcmp.ge.f32.partialorder %v765, 0.0
        %vm772 = vcmp.ge.f32.partialorder %v767, 0.0
        %v773 = vmul.f32 %v761, 0.1
        %v774 = vmul.f32 %v763, 0.1
        %v775 = vmul.f32 %v765, 0.1
        %v776 = vmul.f32 %v767, 0.1
        %v777 = vsel %vm769, %v761, %v773
        %v778 = vsel %vm770, %v763, %v774
        %v779 = vsel %vm771, %v765, %v775
        %v780 = vsel %vm772, %v767, %v776
        %s781 = scalar_lea.vmem %s306, 32 [#allocation6]
        %782 = vst [vmem:[%s781] sm:$0xff] %v777
        %783 = vst [vmem:[%s781 + $0x8] sm:$0xff] %v778
        %784 = vst [vmem:[%s781 + $0x10] sm:$0xff] %v779
        %785 = vst [vmem:[%s781 + $0x18] sm:$0xff] %v780
        %s786 = sand.u32 %s135, 1
        %s787 = scalar_lea.sflag [#allocation5], %s786
        %s788 = sand.u32 %s135, 1
        %s789 = smul.addr %s788, 64
        %s790 = scalar_lea.vmem [#allocation6], %s789
        // Predicated region
        $region82: #{tpu_custom_call.1} parent=72 // pred_check
          %p791 = pneg %p145
        $region83: #{tpu_custom_call.1} parent=72 // pred_check_branch
          %793 = sbr.rel (%p791) target = $region85
        $region84: #{tpu_custom_call.1} parent=72 // pred_region
          #allocation8 [shape = 'u32[6]{0}', space=smem, size = 0x18, scoped, tag = 'DMA stride descriptor']
          %s794 = smul.u32 2, %s23
          %s795 = smul.u32 2, %s24
          %s797 = ssub.s32 1024, 1024
          %798 = vsyncadd %s787, %s797
          %s799 = smul.addr %s795, 2
          %s800 = smul.addr %s794, 8
          %s801 = sadd.s32 %s799, %s800
          %s802 = smul.addr %s801, 128
          %s803 = scalar_lea.hbm %s4, %s802
          %s805 = sshll.u32 1, 14
          %s806 = sxor.u32 4294967295, %s805
          %s809 = sshll.u32 7, 18
          %s810 = sxor.u32 4294967295, %s809
          %s811 = sand.u32 0, %s810
          %s813 = sor.u32 %s811, 0
          %s814 = sshll.u32 %s790, 4
          %s815 = int_to_ptr.vmem [resolvable:$true] %s814
          %821 = sst [smem:[#allocation8]] 512
          %s822 = scalar_lea.smem [#allocation8], 1
          %823 = sst [smem:[%s822]] 1024
          %s824 = scalar_lea.smem [#allocation8], 2
          %825 = sst [smem:[%s824]] 2
          %s826 = scalar_lea.smem [#allocation8], 3
          %827 = sst [smem:[%s826]] 256
          %s828 = scalar_lea.smem [#allocation8], 4
          %829 = sst [smem:[%s828]] 256
          %s830 = scalar_lea.smem [#allocation8], 5
          %831 = sst [smem:[%s830]] 16
          %833 = dma.general %s815, 1024, %s803, %s787, 131072, [#allocation8], %s813, 0
        $region85: #{tpu_custom_call.1} parent=72 // pred_fallthru
          _
      $region73: #{tpu_custom_call.1} parent=5 // pred_fallthru
        _
      %p834 = scmp.le.s32.totalorder 2, %s14
      // Predicated region
      $region86: #{tpu_custom_call.1} parent=5 // pred_check
        %p835 = pneg %p834
      $region87: #{tpu_custom_call.1} parent=5 // pred_check_branch
        %837 = sbr.rel (%p835) target = $region89
      $region88: #{tpu_custom_call.1} parent=5 // pred_region
        %s838 = ssub.s32 %s14, 2
        // Predicated region
        $region90: #{tpu_custom_call.1} parent=88 // pred_check
          %p839 = pneg %p151
        $region91: #{tpu_custom_call.1} parent=88 // pred_check_branch
          %841 = sbr.rel (%p839) target = $region93
        $region92: #{tpu_custom_call.1} parent=88 // pred_region
          %s842 = sand.u32 %s136, 1
          %s843 = scalar_lea.sflag [#allocation5], %s842
          %s844 = sand.u32 %s136, 1
          %s845 = smul.addr %s844, 64
          %s846 = scalar_lea.vmem [#allocation6], %s845
          %847 = dma.done %s843, 1024
        $region93: #{tpu_custom_call.1} parent=88 // pred_fallthru
          _
      $region89: #{tpu_custom_call.1} parent=5 // pred_fallthru
        _
    $region6: #{tpu_custom_call.1} parent=1 // loop_footer
      %s18 = sadd.s32 1, %s14
    $region7: #{tpu_custom_call.1} parent=1 // loop_footer_branch
      %13 = sbr.rel target = $region3
    $region8: #{tpu_custom_call.1} parent=1 // loop_exit
      _
    %848 = vsyncpa [#allocation4], 1
    %s849 = scalar_lea.sflag [#allocation4], 1
    %850 = vsyncpa %s849, 1
    %851 = vsyncpa [#allocation5], 1
    %s852 = scalar_lea.sflag [#allocation5], 1
    %853 = vsyncpa %s852, 1

</llo_original>
